<compile_context>
chip_gen: v7x
topology: tpu7x:2x2x1
jax: 0.10.0
libtpu: 0.0.40
codegen_flags: <defaults>
</compile_context>

<pallas_src>
import jax
import jax.numpy as jnp
from jax.experimental import pallas as pl
from jax.experimental.pallas import tpu as pltpu

EPS = 1e-5


def _round_up(x, m):
    return ((x + m - 1) // m) * m


# -----------------------------------------------------------------------------
# Fused kernel: [pad -> conv3x3 (1 merged matmul) -> BN+bias -> ReLU] x 2 stages.
#   x_ref  : (1, H, W*Cin)        unpadded input rows, f32
#   b1_ref : (3*K1, W*Cout)       merged banded weights, stage 1, bf16
#   b2_ref : (3*K2, W*Cout)       merged banded weights, stage 2, bf16
#   aff_ref: (4, W*Cout)          rows = [scale1, shift1, scale2, shift2], f32
#   o_ref  : (1, H, W*Cout)       lane-dense output, f32
#   xp1_ref: (H+2, K1) f32 VMEM   zero-padded stage-1 input scratch
#   xp2_ref: (H+2, K2) f32 VMEM   zero-padded stage-1 activation scratch
# where K1 = roundup(W*Cin, 128), K2 = roundup(W*Cout, 128).
# -----------------------------------------------------------------------------
def _two_conv_kernel(x_ref, b1_ref, b2_ref, aff_ref, o_ref, xp1_ref, xp2_ref):
    H = o_ref.shape[1]
    wcin = x_ref.shape[2]
    wcout = o_ref.shape[2]
    aff = aff_ref[...]                                        # (4, W*Cout), one vreg-ish load

    # ---- stage 1: zero-pad in VMEM (no XLA pad kernel, no padded HBM copy) ----
    xp1_ref[...] = jnp.zeros_like(xp1_ref)
    xp1_ref[pl.ds(1, H), pl.ds(0, wcin)] = x_ref[0]           # interior <- unpadded rows
    xp1 = xp1_ref[...]                                        # (H+2, K1), f32
    # three height-shifted windows side-by-side on lanes (each K1 = 128-multiple => aligned)
    lhs1 = jnp.concatenate([xp1[0:H], xp1[1:H + 1], xp1[2:H + 2]],
                           axis=1).astype(jnp.bfloat16)        # (H, 3*K1), cast once
    y1 = jnp.dot(lhs1, b1_ref[...], preferred_element_type=jnp.float32)  # (H, W*Cout)
    y1 = jnp.maximum(y1 * aff[0:1, :] + aff[1:2, :], 0.0)     # conv-bias+BN folded, ReLU

    # ---- stage 2: activation never leaves VMEM ----
    xp2_ref[...] = jnp.zeros_like(xp2_ref)
    xp2_ref[pl.ds(1, H), pl.ds(0, wcout)] = y1
    xp2 = xp2_ref[...]                                        # (H+2, K2), f32
    lhs2 = jnp.concatenate([xp2[0:H], xp2[1:H + 1], xp2[2:H + 2]],
                           axis=1).astype(jnp.bfloat16)        # (H, 3*K2)
    y2 = jnp.dot(lhs2, b2_ref[...], preferred_element_type=jnp.float32)
    y2 = jnp.maximum(y2 * aff[2:3, :] + aff[3:4, :], 0.0)
    o_ref[0] = y2.astype(o_ref.dtype)                         # (H, W*Cout), 128-lane dense


def _band_weights(w, W, kpad):
    """w: (3, 3, Cin, Cout) HWIO -> merged banded RHS of shape (3*kpad, W*Cout) with
    B[kh*kpad + p*Cin + c, j*Cout + o] = w[kh, p-j+1, c, o] for p-j+1 in {0,1,2}, else 0.
    Scratch row layout is q = p*Cin + c (p in [0, W)); out-of-range taps contribute 0
    exactly like SAME zero-padding."""
    KH, KW, Cin, Cout = w.shape
    B = jnp.zeros((KH, W * Cin, W * Cout), jnp.float32)
    for kw in range(KW):
        # output column j draws input position p = j + kw - 1  ->  sel[p, j] = 1
        sel = jnp.eye(W, W, k=1 - kw, dtype=jnp.float32)
        B = B + jnp.einsum("pj,kco->kpcjo", sel, w[:, kw]).reshape(KH, W * Cin, W * Cout)
    B = jnp.pad(B, ((0, 0), (0, kpad - W * Cin), (0, 0)))     # pad per-tap K to kpad lanes
    return B.reshape(KH * kpad, W * Cout)


def _affine_row(p, W):
    """Fold conv bias + BN (inference) into per-column scale/shift rows of width W*Cout."""
    scale = p["gamma"] / jnp.sqrt(p["var"] + EPS)             # (Cout,)
    shift = (p["b"] - p["mean"]) * scale + p["beta"]          # (Cout,)
    Cout = scale.shape[0]
    return (jnp.tile(scale, W).reshape(1, W * Cout),
            jnp.tile(shift, W).reshape(1, W * Cout))


def two_conv_forward(x, params):
    """x: (N, H, W, Cin) f32 NHWC.  Returns (N, H, W, Cout) f32."""
    p1, p2 = params
    N, H, W, Cin = x.shape
    Cout = p1["w"].shape[-1]
    K1 = _round_up(W * Cin, 128)
    K2 = _round_up(W * Cout, 128)

    B1 = _band_weights(p1["w"], W, K1).astype(jnp.bfloat16)   # (3*K1, W*Cout)
    B2 = _band_weights(p2["w"], W, K2).astype(jnp.bfloat16)   # (3*K2, W*Cout)
    s1, t1 = _affine_row(p1, W)
    s2, t2 = _affine_row(p2, W)
    aff = jnp.concatenate([s1, t1, s2, t2], axis=0)           # (4, W*Cout)

    xf = x.reshape(N, H, W * Cin)                             # contiguous (free) lane flatten

    flops = 2 * N * H * (W * Cout) * (3 * K1 + 3 * K2)
    bytes_accessed = int(xf.size * 4 + B1.size * 2 + B2.size * 2 + aff.size * 4
                         + N * H * W * Cout * 4)

    out = pl.pallas_call(
        _two_conv_kernel,
        out_shape=jax.ShapeDtypeStruct((N, H, W * Cout), jnp.float32),
        grid=(N,),                                            # v7x: one image per TensorCore
        in_specs=[
            pl.BlockSpec((1, H, W * Cin), lambda n: (n, 0, 0)),
            pl.BlockSpec((3 * K1, W * Cout), lambda n: (0, 0)),   # fetched once
            pl.BlockSpec((3 * K2, W * Cout), lambda n: (0, 0)),   # fetched once
            pl.BlockSpec((4, W * Cout), lambda n: (0, 0)),
        ],
        out_specs=pl.BlockSpec((1, H, W * Cout), lambda n: (n, 0, 0)),   # lane-dense store
        scratch_shapes=[
            pltpu.VMEM((H + 2, K1), jnp.float32),             # padded stage-1 input
            pltpu.VMEM((H + 2, K2), jnp.float32),             # padded stage-1 activation
        ],
        compiler_params=pltpu.CompilerParams(
            dimension_semantics=("parallel",),
            vmem_limit_bytes=32 * 1024 * 1024,
        ),
        cost_estimate=pl.CostEstimate(
            flops=flops, transcendentals=0, bytes_accessed=bytes_accessed),
    )(xf, B1, B2, aff)

    # Free, contiguous reshape back to NHWC (last dim factors as (W, Cout)).
    return out.reshape(N, H, W, Cout)


# -----------------------------------------------------------------------------
# Deterministic parameter construction (mirrors nn.Conv2d / nn.BatchNorm2d shapes).
# -----------------------------------------------------------------------------
def init_params(key, in_channel, out_channel):
    params = []
    cin = in_channel
    for _ in range(2):
        key, kw_, kb, kg, kbe, km, kv = jax.random.split(key, 7)
        bound = 1.0 / (9.0 * cin) ** 0.5
        w = jax.random.uniform(kw_, (3, 3, cin, out_channel), jnp.float32, -bound, bound)
        b = jax.random.uniform(kb, (out_channel,), jnp.float32, -bound, bound)
        gamma = 1.0 + 0.1 * jax.random.normal(kg, (out_channel,), jnp.float32)
        beta = 0.1 * jax.random.normal(kbe, (out_channel,), jnp.float32)
        mean = 0.1 * jax.random.normal(km, (out_channel,), jnp.float32)
        var = 1.0 + 0.1 * jnp.abs(jax.random.normal(kv, (out_channel,), jnp.float32))
        params.append(dict(w=w, b=b, gamma=gamma, beta=beta, mean=mean, var=var))
        cin = out_channel
    return params


# Pure-JAX references. mxu_bf16=True mirrors the kernel's bf16-operand / f32-accumulate
# MXU math so the comparison can be tight; mxu_bf16=False is a full-f32 sanity baseline.
def reference(x, params, mxu_bf16):
    for p in params:
        xin = x.astype(jnp.bfloat16) if mxu_bf16 else x
        w = p["w"].astype(jnp.bfloat16) if mxu_bf16 else p["w"]
        y = jax.lax.conv_general_dilated(
            xin, w, window_strides=(1, 1), padding="SAME",
            dimension_numbers=("NHWC", "HWIO", "NHWC"),
            preferred_element_type=jnp.float32,
            precision=None if mxu_bf16 else jax.lax.Precision.HIGHEST,
        ) + p["b"]
        scale = p["gamma"] / jnp.sqrt(p["var"] + EPS)
        x = jnp.maximum((y - p["mean"]) * scale + p["beta"], 0.0)
    return x


if __name__ == "__main__":
    in_channel, out_channel = 4, 8
    N, H, W = 2, 16, 16

    key = jax.random.PRNGKey(0)
    key, xk = jax.random.split(key)
    x = jax.random.normal(xk, (N, H, W, in_channel), jnp.float32)  # NHWC (PyTorch NCHW: [2,4,16,16])
    params = init_params(key, in_channel, out_channel)

    fwd = jax.jit(two_conv_forward)
    out = jax.block_until_ready(fwd(x, params))
    assert out.shape == (N, H, W, out_channel), out.shape

    ref_bf16 = reference(x, params, mxu_bf16=True)   # same MXU math as the kernel
    ref_f32 = reference(x, params, mxu_bf16=False)   # full-f32 baseline

    if not jnp.allclose(out, ref_bf16, atol=5e-3, rtol=5e-3):
        err = float(jnp.max(jnp.abs(out - ref_bf16)))
        raise AssertionError(f"Pallas result does not match bf16-MXU reference (max |err|={err})")
    if not jnp.allclose(out, ref_f32, atol=3e-2, rtol=3e-2):
        err = float(jnp.max(jnp.abs(out - ref_f32)))
        raise AssertionError(f"Pallas result does not match f32 reference (max |err|={err})")

    print("KERNEL_OK")
</pallas_src>

<mosaic_0001>
module attributes {stable_mosaic.version = 11 : i64} {
  func.func @_two_conv_kernel(%arg0: i32, %arg1: memref<1x16x64xf32, #tpu.memory_space<vmem>>, %arg2: memref<384x128xbf16, #tpu.memory_space<vmem>>, %arg3: memref<384x128xbf16, #tpu.memory_space<vmem>>, %arg4: memref<4x128xf32, #tpu.memory_space<vmem>>, %arg5: memref<1x16x128xf32, #tpu.memory_space<vmem>>, %arg6: memref<18x128xf32, #tpu.memory_space<vmem>>, %arg7: memref<18x128xf32, #tpu.memory_space<vmem>>) attributes {dimension_semantics = [#tpu.dimension_semantics<parallel>], iteration_bounds = array<i64: 2>, scalar_prefetch = 0 : i64, scratch_operands = 2 : i64, tpu.core_type = #tpu.core_type<tc>, window_params = [{transform_indices = @transform_0, window_bounds = array<i64: 1, 16, 64>}, {pipeline_mode = #tpu.pipeline_mode<synchronous>, transform_indices = @transform_1, window_bounds = array<i64: 384, 128>}, {pipeline_mode = #tpu.pipeline_mode<synchronous>, transform_indices = @transform_2, window_bounds = array<i64: 384, 128>}, {pipeline_mode = #tpu.pipeline_mode<synchronous>, transform_indices = @transform_3, window_bounds = array<i64: 4, 128>}, {transform_indices = @transform_4, window_bounds = array<i64: 1, 16, 128>}]} {
    %c0 = arith.constant 0 : index
    %c0_0 = arith.constant 0 : index
    %0 = vector.load %arg4[%c0, %c0_0] : memref<4x128xf32, #tpu.memory_space<vmem>>, vector<4x128xf32>
    %cst = arith.constant 0.000000e+00 : f32
    %1 = vector.broadcast %cst : f32 to vector<18x128xf32>
    %c0_1 = arith.constant 0 : index
    %c0_2 = arith.constant 0 : index
    %2 = vector.load %arg6[%c0_1, %c0_2] : memref<18x128xf32, #tpu.memory_space<vmem>>, vector<18x128xf32>
    tpu.vector_store %arg6[%c0_1, %c0_2], %1 {strides = array<i32>} : memref<18x128xf32, #tpu.memory_space<vmem>>, vector<18x128xf32>,
    %c0_3 = arith.constant 0 : index
    %c0_4 = arith.constant 0 : index
    %c0_5 = arith.constant 0 : index
    %3 = vector.load %arg1[%c0_3, %c0_4, %c0_5] : memref<1x16x64xf32, #tpu.memory_space<vmem>>, vector<1x16x64xf32>
    %4 = vector.shape_cast %3 : vector<1x16x64xf32> to vector<16x64xf32>
    %c1 = arith.constant 1 : index
    %c0_6 = arith.constant 0 : index
    %5 = vector.load %arg6[%c1, %c0_6] : memref<18x128xf32, #tpu.memory_space<vmem>>, vector<16x64xf32>
    tpu.vector_store %arg6[%c1, %c0_6], %4 {strides = array<i32>} : memref<18x128xf32, #tpu.memory_space<vmem>>, vector<16x64xf32>,
    %c0_7 = arith.constant 0 : index
    %c0_8 = arith.constant 0 : index
    %6 = vector.load %arg6[%c0_7, %c0_8] : memref<18x128xf32, #tpu.memory_space<vmem>>, vector<18x128xf32>
    %7 = vector.extract_strided_slice %6 {offsets = [0, 0], sizes = [16, 128], strides = [1, 1]} : vector<18x128xf32> to vector<16x128xf32>
    %8 = vector.extract_strided_slice %6 {offsets = [1, 0], sizes = [16, 128], strides = [1, 1]} : vector<18x128xf32> to vector<16x128xf32>
    %9 = vector.extract_strided_slice %6 {offsets = [2, 0], sizes = [16, 128], strides = [1, 1]} : vector<18x128xf32> to vector<16x128xf32>
    %10 = tpu.concatenate %7, %8, %9 in 1 : vector<16x128xf32>, vector<16x128xf32>, vector<16x128xf32> -> vector<16x384xf32>
    %11 = arith.truncf %10 : vector<16x384xf32> to vector<16x384xbf16>
    %c0_9 = arith.constant 0 : index
    %c0_10 = arith.constant 0 : index
    %12 = vector.load %arg2[%c0_9, %c0_10] : memref<384x128xbf16, #tpu.memory_space<vmem>>, vector<384x128xbf16>
    %cst_11 = arith.constant dense<0.000000e+00> : vector<16x128xf32>
    %13 = tpu.matmul %11, %12, %cst_11 {dimension_numbers = #tpu.dot_dimension_numbers<[1], [0], [0], [1], [0, 0, 1, 1], [], []>} : vector<16x384xbf16>, vector<384x128xbf16>, vector<16x128xf32> -> vector<16x128xf32>
    %14 = vector.extract_strided_slice %0 {offsets = [0, 0], sizes = [1, 128], strides = [1, 1]} : vector<4x128xf32> to vector<1x128xf32>
    %15 = vector.broadcast %14 : vector<1x128xf32> to vector<16x128xf32>
    %16 = arith.mulf %13, %15 : vector<16x128xf32>
    %17 = vector.extract_strided_slice %0 {offsets = [1, 0], sizes = [1, 128], strides = [1, 1]} : vector<4x128xf32> to vector<1x128xf32>
    %18 = vector.broadcast %17 : vector<1x128xf32> to vector<16x128xf32>
    %19 = arith.addf %16, %18 : vector<16x128xf32>
    %cst_12 = arith.constant 0.000000e+00 : f32
    %20 = vector.broadcast %cst_12 : f32 to vector<16x128xf32>
    %21 = arith.maximumf %19, %20 : vector<16x128xf32>
    %cst_13 = arith.constant 0.000000e+00 : f32
    %22 = vector.broadcast %cst_13 : f32 to vector<18x128xf32>
    %c0_14 = arith.constant 0 : index
    %c0_15 = arith.constant 0 : index
    %23 = vector.load %arg7[%c0_14, %c0_15] : memref<18x128xf32, #tpu.memory_space<vmem>>, vector<18x128xf32>
    tpu.vector_store %arg7[%c0_14, %c0_15], %22 {strides = array<i32>} : memref<18x128xf32, #tpu.memory_space<vmem>>, vector<18x128xf32>,
    %c1_16 = arith.constant 1 : index
    %c0_17 = arith.constant 0 : index
    %24 = vector.load %arg7[%c1_16, %c0_17] : memref<18x128xf32, #tpu.memory_space<vmem>>, vector<16x128xf32>
    tpu.vector_store %arg7[%c1_16, %c0_17], %21 {strides = array<i32>} : memref<18x128xf32, #tpu.memory_space<vmem>>, vector<16x128xf32>,
    %c0_18 = arith.constant 0 : index
    %c0_19 = arith.constant 0 : index
    %25 = vector.load %arg7[%c0_18, %c0_19] : memref<18x128xf32, #tpu.memory_space<vmem>>, vector<18x128xf32>
    %26 = vector.extract_strided_slice %25 {offsets = [0, 0], sizes = [16, 128], strides = [1, 1]} : vector<18x128xf32> to vector<16x128xf32>
    %27 = vector.extract_strided_slice %25 {offsets = [1, 0], sizes = [16, 128], strides = [1, 1]} : vector<18x128xf32> to vector<16x128xf32>
    %28 = vector.extract_strided_slice %25 {offsets = [2, 0], sizes = [16, 128], strides = [1, 1]} : vector<18x128xf32> to vector<16x128xf32>
    %29 = tpu.concatenate %26, %27, %28 in 1 : vector<16x128xf32>, vector<16x128xf32>, vector<16x128xf32> -> vector<16x384xf32>
    %30 = arith.truncf %29 : vector<16x384xf32> to vector<16x384xbf16>
    %c0_20 = arith.constant 0 : index
    %c0_21 = arith.constant 0 : index
    %31 = vector.load %arg3[%c0_20, %c0_21] : memref<384x128xbf16, #tpu.memory_space<vmem>>, vector<384x128xbf16>
    %cst_22 = arith.constant dense<0.000000e+00> : vector<16x128xf32>
    %32 = tpu.matmul %30, %31, %cst_22 {dimension_numbers = #tpu.dot_dimension_numbers<[1], [0], [0], [1], [0, 0, 1, 1], [], []>} : vector<16x384xbf16>, vector<384x128xbf16>, vector<16x128xf32> -> vector<16x128xf32>
    %33 = vector.extract_strided_slice %0 {offsets = [2, 0], sizes = [1, 128], strides = [1, 1]} : vector<4x128xf32> to vector<1x128xf32>
    %34 = vector.broadcast %33 : vector<1x128xf32> to vector<16x128xf32>
    %35 = arith.mulf %32, %34 : vector<16x128xf32>
    %36 = vector.extract_strided_slice %0 {offsets = [3, 0], sizes = [1, 128], strides = [1, 1]} : vector<4x128xf32> to vector<1x128xf32>
    %37 = vector.broadcast %36 : vector<1x128xf32> to vector<16x128xf32>
    %38 = arith.addf %35, %37 : vector<16x128xf32>
    %cst_23 = arith.constant 0.000000e+00 : f32
    %39 = vector.broadcast %cst_23 : f32 to vector<16x128xf32>
    %40 = arith.maximumf %38, %39 : vector<16x128xf32>
    %c0_24 = arith.constant 0 : index
    %c0_25 = arith.constant 0 : index
    %c0_26 = arith.constant 0 : index
    %41 = vector.load %arg5[%c0_24, %c0_25, %c0_26] : memref<1x16x128xf32, #tpu.memory_space<vmem>>, vector<1x16x128xf32>
    %42 = vector.shape_cast %41 : vector<1x16x128xf32> to vector<16x128xf32>
    %43 = vector.shape_cast %40 : vector<16x128xf32> to vector<1x16x128xf32>
    tpu.vector_store %arg5[%c0_24, %c0_25, %c0_26], %43 {strides = array<i32>} : memref<1x16x128xf32, #tpu.memory_space<vmem>>, vector<1x16x128xf32>,
    return
  }
  func.func @transform_0(%arg0: i32) -> (i32, i32, i32) {
    %c0_i32 = arith.constant 0 : i32
    %c0_i32_0 = arith.constant 0 : i32
    %c0_i32_1 = arith.constant 0 : i32
    return %arg0, %c0_i32, %c0_i32_0 : i32, i32, i32
  }
  func.func @transform_1(%arg0: i32) -> (i32, i32) {
    %c0_i32 = arith.constant 0 : i32
    %c0_i32_0 = arith.constant 0 : i32
    %c0_i32_1 = arith.constant 0 : i32
    return %c0_i32, %c0_i32_0 : i32, i32
  }
  func.func @transform_2(%arg0: i32) -> (i32, i32) {
    %c0_i32 = arith.constant 0 : i32
    %c0_i32_0 = arith.constant 0 : i32
    %c0_i32_1 = arith.constant 0 : i32
    return %c0_i32, %c0_i32_0 : i32, i32
  }
  func.func @transform_3(%arg0: i32) -> (i32, i32) {
    %c0_i32 = arith.constant 0 : i32
    %c0_i32_0 = arith.constant 0 : i32
    %c0_i32_1 = arith.constant 0 : i32
    return %c0_i32, %c0_i32_0 : i32, i32
  }
  func.func @transform_4(%arg0: i32) -> (i32, i32, i32) {
    %c0_i32 = arith.constant 0 : i32
    %c0_i32_0 = arith.constant 0 : i32
    %c0_i32_1 = arith.constant 0 : i32
    return %arg0, %c0_i32, %c0_i32_0 : i32, i32, i32
  }
}

</mosaic_0001>

<llo_original>
// kernel: tile.23
$region0: #{tile.23}
  #allocation0 [shape = 's32[1]{0}', space=sflag, size = 0x4, scoped, tag = 'scoped memory for tile.23']
  %s0 = inlined_call_operand.vmem [shape: f32[8], index: 0, kind: input, shape index: {}]
  %s1 = inlined_call_operand.vmem [shape: f32[16,8], index: 1, kind: output, shape index: {}]
  // Predicated region
  $region2: #{tile.23} parent=0 // pred_check
    _
  $region3: #{tile.23} parent=0 // pred_check_branch
    %3 = sbr.rel (0) target = $region5
  $region4: #{tile.23} parent=0 // pred_region
    _
  $region5: #{tile.23} parent=0 // pred_fallthru
    _
  %v4 = vld [vmem:[%s0] ss:$0 sm:$0xff]
  %5 = vst [vmem:[%s1] sm:$0xff] %v4
  %s6 = scalar_lea.vmem %s1, 8
  %7 = vst [vmem:[%s6] sm:$0xff] %v4

// kernel: tile.24
$region0: #{tile.24}
  %s0 = inlined_call_operand.vmem [shape: f32[16,8], index: 0, kind: input, shape index: {}]
  %s1 = inlined_call_operand.vmem [shape: f32[1,128], index: 1, kind: output, shape index: {}]
  $region1: #{tile.24} parent=0
    #allocation0 [shape = 'u8[4096]{0}', space=vmem, size = 0x1000, scoped, tag = 'scoped mem for output reshape']
    %v2 = vld [vmem:[%s0] sm:$0x1]
    %vm3 = vcmask 64512
    %4 = vst.msk [vmem:[#allocation0] sm:$0x1] %vm3, %v2
    %s5 = scalar_lea.vmem %s0, 15
    %v6 = vld [vmem:[%s5] sm:$0x1]
    %7 = vrot.lane.b32.xlu0 %v6, 120
    %v8 = vpop.permute.xlu0 %7
    %vm9 = vcmask 1048512
    %10 = vst.msk [vmem:[#allocation0] sm:$0x1] %vm9, %v8
    %s11 = scalar_lea.vmem %s0, 14
    %v12 = vld [vmem:[%s11] sm:$0x1]
    %13 = vrot.lane.b32.xlu0 %v12, 112
    %v14 = vpop.permute.xlu0 %13
    %vm15 = vcmask 982912
    %16 = vst.msk [vmem:[#allocation0] sm:$0x1] %vm15, %v14
    %s17 = scalar_lea.vmem %s0, 13
    %v18 = vld [vmem:[%s17] sm:$0x1]
    %19 = vrot.lane.b32.xlu0 %v18, 104
    %v20 = vpop.permute.xlu0 %19
    %vm21 = vcmask 917312
    %22 = vst.msk [vmem:[#allocation0] sm:$0x1] %vm21, %v20
    %s23 = scalar_lea.vmem %s0, 12
    %v24 = vld [vmem:[%s23] sm:$0x1]
    %25 = vrot.lane.b32.xlu0 %v24, 96
    %v26 = vpop.permute.xlu0 %25
    %vm27 = vcmask 851712
    %28 = vst.msk [vmem:[#allocation0] sm:$0x1] %vm27, %v26
    %s29 = scalar_lea.vmem %s0, 11
    %v30 = vld [vmem:[%s29] sm:$0x1]
    %31 = vrot.lane.b32.xlu0 %v30, 88
    %v32 = vpop.permute.xlu0 %31
    %vm33 = vcmask 786112
    %34 = vst.msk [vmem:[#allocation0] sm:$0x1] %vm33, %v32
    %s35 = scalar_lea.vmem %s0, 10
    %v36 = vld [vmem:[%s35] sm:$0x1]
    %37 = vrot.lane.b32.xlu0 %v36, 80
    %v38 = vpop.permute.xlu0 %37
    %vm39 = vcmask 720512
    %40 = vst.msk [vmem:[#allocation0] sm:$0x1] %vm39, %v38
    %s41 = scalar_lea.vmem %s0, 9
    %v42 = vld [vmem:[%s41] sm:$0x1]
    %43 = vrot.lane.b32.xlu0 %v42, 72
    %v44 = vpop.permute.xlu0 %43
    %vm45 = vcmask 654912
    %46 = vst.msk [vmem:[#allocation0] sm:$0x1] %vm45, %v44
    %s47 = scalar_lea.vmem %s0, 8
    %v48 = vld [vmem:[%s47] sm:$0x1]
    %49 = vrot.lane.b32.xlu0 %v48, 64
    %v50 = vpop.permute.xlu0 %49
    %vm51 = vcmask 589312
    %52 = vst.msk [vmem:[#allocation0] sm:$0x1] %vm51, %v50
    %s53 = scalar_lea.vmem %s0, 7
    %v54 = vld [vmem:[%s53] sm:$0x1]
    %55 = vrot.lane.b32.xlu0 %v54, 56
    %v56 = vpop.permute.xlu0 %55
    %vm57 = vcmask 523712
    %58 = vst.msk [vmem:[#allocation0] sm:$0x1] %vm57, %v56
    %s59 = scalar_lea.vmem %s0, 6
    %v60 = vld [vmem:[%s59] sm:$0x1]
    %61 = vrot.lane.b32.xlu0 %v60, 48
    %v62 = vpop.permute.xlu0 %61
    %vm63 = vcmask 458112
    %64 = vst.msk [vmem:[#allocation0] sm:$0x1] %vm63, %v62
    %s65 = scalar_lea.vmem %s0, 5
    %v66 = vld [vmem:[%s65] sm:$0x1]
    %67 = vrot.lane.b32.xlu0 %v66, 40
    %v68 = vpop.permute.xlu0 %67
    %vm69 = vcmask 392512
    %70 = vst.msk [vmem:[#allocation0] sm:$0x1] %vm69, %v68
    %s71 = scalar_lea.vmem %s0, 4
    %v72 = vld [vmem:[%s71] sm:$0x1]
    %73 = vrot.lane.b32.xlu0 %v72, 32
    %v74 = vpop.permute.xlu0 %73
    %vm75 = vcmask 326912
    %76 = vst.msk [vmem:[#allocation0] sm:$0x1] %vm75, %v74
    %s77 = scalar_lea.vmem %s0, 3
    %v78 = vld [vmem:[%s77] sm:$0x1]
    %79 = vrot.lane.b32.xlu0 %v78, 24
    %v80 = vpop.permute.xlu0 %79
    %vm81 = vcmask 261312
    %82 = vst.msk [vmem:[#allocation0] sm:$0x1] %vm81, %v80
    %s83 = scalar_lea.vmem %s0, 2
    %v84 = vld [vmem:[%s83] sm:$0x1]
    %85 = vrot.lane.b32.xlu0 %v84, 16
    %v86 = vpop.permute.xlu0 %85
    %vm87 = vcmask 195712
    %88 = vst.msk [vmem:[#allocation0] sm:$0x1] %vm87, %v86
    %s89 = scalar_lea.vmem %s0, 1
    %v90 = vld [vmem:[%s89] sm:$0x1]
    %91 = vrot.lane.b32.xlu0 %v90, 8
    %v92 = vpop.permute.xlu0 %91
    %vm93 = vcmask 130112
    %94 = vst.msk [vmem:[#allocation0] sm:$0x1] %vm93, %v92
    %s96 = sshllo.u32 0, 1
    %v98 = vld [vmem:[#allocation0] sm:%s96]
    %s99 = sshllo.u32 0, 1
    %100 = vst [vmem:[%s1] sm:%s99] %v98

// kernel: two_conv_forward.1
$region0: #{two_conv_forward.1}
  #allocation0 [shape = 'u32[]', space=smem, size = 0x4, offset = 0x4, fixed_abs, tag = 'smem constant byte address 0x4 - core index']
  #allocation1 [shape = 'u32[144,128]{1,0:T(1,128)}', space=vmem, size = 0x12000, scoped, tag = 'internal scratch']
  #allocation2 [shape = 'f32[18,128]{1,0:T(8,128)}', space=vmem, size = 0x3000, scoped, tag = 'scratch operand']
  #allocation3 [shape = 'f32[18,128]{1,0:T(8,128)}', space=vmem, size = 0x3000, scoped, tag = 'scratch operand']
  %s0 = inlined_call_operand.vmem [shape: f32[2,16,64], index: 0, kind: input, shape index: {}]
  %s1 = inlined_call_operand.vmem [shape: bf16[384,128], index: 1, kind: input, shape index: {}]
  %s2 = inlined_call_operand.vmem [shape: bf16[384,128], index: 2, kind: input, shape index: {}]
  %s3 = inlined_call_operand.vmem [shape: f32[4,128], index: 3, kind: input, shape index: {}]
  %s4 = inlined_call_operand.vmem [shape: f32[2,16,128], index: 4, kind: output, shape index: {}]
  %s5 = sld [smem:[#allocation0]]
  $region49: #{two_conv_forward.1} parent=0
    _
  %s7 = ssub.s32 1, %s5
  %s8 = scalar_select 0, %s7, %s5
  loop: start=0, step=1, limit=4
  $region2: #{two_conv_forward.1} parent=0 // loop_pre_header
    _
  $region3: #{two_conv_forward.1} parent=0 // loop_header
    %s10 = sphi 0, %s14
    %p11 = scmp.ge.s32.totalorder %s10, 4
    %s20 = sphi 0, %s22
    %s23 = sphi 0, %s20
    %s24 = sphi 0, %s23
    %s40 = sphi 0, %s24
    %s44 = sphi 0, %s44
    %s46 = sphi 0, %s44
    %s47 = sphi 0, %s46
    %s61 = sphi 0, %s47
    %s65 = sphi 0, %s65
    %s67 = sphi 0, %s65
    %s68 = sphi 0, %s67
    %s82 = sphi 0, %s68
    %s86 = sphi 0, %s86
    %s88 = sphi 0, %s86
    %s89 = sphi 0, %s88
    %s103 = sphi 0, %s89
    %s109 = sphi 0, %s111
    %s112 = sphi 0, %s109
    %s113 = sphi 0, %s112
    %s129 = sphi 0, %s113
  $region4: #{two_conv_forward.1} parent=0 // loop_header_branch
    %13 = sbr.rel (%p11) target = $region8
  $region5: #{two_conv_forward.1} parent=0 // loop_body
    %s15 = ssub.s32 %s10, 1
    %s16 = ssub.s32 %s10, 2
    %s17 = sadd.s32 %s10, 1
    %s18 = ssub.s32 %s10, %s17
    %p19 = scmp.eq.s32.totalorder %s18, 0
    %s21 = sadd.s32 %s20, 1
    %s22 = scalar_select %p19, %s20, %s21
    %p25 = pneg %p19
    %p26 = scmp.eq.s32.totalorder %s10, 1
    %p27 = por %p25, %p26
    %p28 = scmp.ne.s32.totalorder %s20, %s23
    %p29 = scmp.eq.s32.totalorder %s10, 0
    %p30 = por %p28, %p29
    %p31 = scmp.ne.s32.totalorder %s20, %s23
    %p32 = scmp.eq.s32.totalorder %s15, 1
    %p33 = por %p31, %p32
    %p34 = scmp.ne.s32.totalorder %s23, %s24
    %p35 = scmp.eq.s32.totalorder %s15, 0
    %p36 = por %p34, %p35
    %p37 = scmp.ne.s32.totalorder %s23, %s24
    %p38 = scmp.eq.s32.totalorder %s16, 1
    %p39 = por %p37, %p38
    %p41 = scmp.ne.s32.totalorder %s24, %s40
    %p42 = scmp.eq.s32.totalorder %s16, 0
    %p43 = por %p41, %p42
    %s45 = sadd.s32 %s44, 1
    %p48 = scmp.eq.s32.totalorder %s10, 1
    %p49 = scmp.ne.s32.totalorder %s44, %s46
    %p50 = scmp.eq.s32.totalorder %s10, 0
    %p51 = por %p49, %p50
    %p52 = scmp.ne.s32.totalorder %s44, %s46
    %p53 = scmp.eq.s32.totalorder %s15, 1
    %p54 = por %p52, %p53
    %p55 = scmp.ne.s32.totalorder %s46, %s47
    %p56 = scmp.eq.s32.totalorder %s15, 0
    %p57 = por %p55, %p56
    %p58 = scmp.ne.s32.totalorder %s46, %s47
    %p59 = scmp.eq.s32.totalorder %s16, 1
    %p60 = por %p58, %p59
    %p62 = scmp.ne.s32.totalorder %s47, %s61
    %p63 = scmp.eq.s32.totalorder %s16, 0
    %p64 = por %p62, %p63
    %s66 = sadd.s32 %s65, 1
    %p69 = scmp.eq.s32.totalorder %s10, 1
    %p70 = scmp.ne.s32.totalorder %s65, %s67
    %p71 = scmp.eq.s32.totalorder %s10, 0
    %p72 = por %p70, %p71
    %p73 = scmp.ne.s32.totalorder %s65, %s67
    %p74 = scmp.eq.s32.totalorder %s15, 1
    %p75 = por %p73, %p74
    %p76 = scmp.ne.s32.totalorder %s67, %s68
    %p77 = scmp.eq.s32.totalorder %s15, 0
    %p78 = por %p76, %p77
    %p79 = scmp.ne.s32.totalorder %s67, %s68
    %p80 = scmp.eq.s32.totalorder %s16, 1
    %p81 = por %p79, %p80
    %p83 = scmp.ne.s32.totalorder %s68, %s82
    %p84 = scmp.eq.s32.totalorder %s16, 0
    %p85 = por %p83, %p84
    %s87 = sadd.s32 %s86, 1
    %p90 = scmp.eq.s32.totalorder %s10, 1
    %p91 = scmp.ne.s32.totalorder %s86, %s88
    %p92 = scmp.eq.s32.totalorder %s10, 0
    %p93 = por %p91, %p92
    %p94 = scmp.ne.s32.totalorder %s86, %s88
    %p95 = scmp.eq.s32.totalorder %s15, 1
    %p96 = por %p94, %p95
    %p97 = scmp.ne.s32.totalorder %s88, %s89
    %p98 = scmp.eq.s32.totalorder %s15, 0
    %p99 = por %p97, %p98
    %p100 = scmp.ne.s32.totalorder %s88, %s89
    %p101 = scmp.eq.s32.totalorder %s16, 1
    %p102 = por %p100, %p101
    %p104 = scmp.ne.s32.totalorder %s89, %s103
    %p105 = scmp.eq.s32.totalorder %s16, 0
    %p106 = por %p104, %p105
    %s107 = ssub.s32 %s10, %s17
    %p108 = scmp.eq.s32.totalorder %s107, 0
    %s110 = sadd.s32 %s109, 1
    %s111 = scalar_select %p108, %s109, %s110
    %p114 = pneg %p108
    %p115 = scmp.eq.s32.totalorder %s10, 1
    %p116 = por %p114, %p115
    %p117 = scmp.ne.s32.totalorder %s109, %s112
    %p118 = scmp.eq.s32.totalorder %s10, 0
    %p119 = por %p117, %p118
    %p120 = scmp.ne.s32.totalorder %s109, %s112
    %p121 = scmp.eq.s32.totalorder %s15, 1
    %p122 = por %p120, %p121
    %p123 = scmp.ne.s32.totalorder %s112, %s113
    %p124 = scmp.eq.s32.totalorder %s15, 0
    %p125 = por %p123, %p124
    %p126 = scmp.ne.s32.totalorder %s112, %s113
    %p127 = scmp.eq.s32.totalorder %s16, 1
    %p128 = por %p126, %p127
    %p130 = scmp.ne.s32.totalorder %s113, %s129
    %p131 = scmp.eq.s32.totalorder %s16, 0
    %p132 = por %p130, %p131
    %p133 = scmp.le.s32.totalorder 1, %s10
    %p134 = scmp.lt.s32.totalorder %s10, 3
    %p135 = pnand %p133, %p134
    %p136 = pneg %p135
    // Predicated region
    $region9: #{two_conv_forward.1} parent=5 // pred_check
      _
    $region10: #{two_conv_forward.1} parent=5 // pred_check_branch
      %138 = sbr.rel (%p135) target = $region12
    $region11: #{two_conv_forward.1} parent=5 // pred_region
      %s139 = ssub.s32 %s10, 1
      // Predicated region
      $region13: #{two_conv_forward.1} parent=11 // pred_check
        %p140 = pneg %p57
      $region14: #{two_conv_forward.1} parent=11 // pred_check_branch
        %142 = sbr.rel (%p140) target = $region16
      $region15: #{two_conv_forward.1} parent=11 // pred_region
        _
      $region16: #{two_conv_forward.1} parent=11 // pred_fallthru
        _
      // Predicated region
      $region17: #{two_conv_forward.1} parent=11 // pred_check
        %p143 = pneg %p78
      $region18: #{two_conv_forward.1} parent=11 // pred_check_branch
        %145 = sbr.rel (%p143) target = $region20
      $region19: #{two_conv_forward.1} parent=11 // pred_region
        _
      $region20: #{two_conv_forward.1} parent=11 // pred_fallthru
        _
      // Predicated region
      $region21: #{two_conv_forward.1} parent=11 // pred_check
        %p146 = pneg %p99
      $region22: #{two_conv_forward.1} parent=11 // pred_check_branch
        %148 = sbr.rel (%p146) target = $region24
      $region23: #{two_conv_forward.1} parent=11 // pred_region
        _
      $region24: #{two_conv_forward.1} parent=11 // pred_fallthru
        _
    $region12: #{two_conv_forward.1} parent=5 // pred_fallthru
      _
    %p149 = scmp.lt.s32.totalorder %s10, 2
    // Predicated region
    $region25: #{two_conv_forward.1} parent=5 // pred_check
      %p150 = pneg %p149
    $region26: #{two_conv_forward.1} parent=5 // pred_check_branch
      %152 = sbr.rel (%p150) target = $region28
    $region27: #{two_conv_forward.1} parent=5 // pred_region
      // Predicated region
      $region29: #{two_conv_forward.1} parent=27 // pred_check
        %p153 = pneg %p30
      $region30: #{two_conv_forward.1} parent=27 // pred_check_branch
        %155 = sbr.rel (%p153) target = $region32
      $region31: #{two_conv_forward.1} parent=27 // pred_region
        %p156 = scmp.lt.s32.totalorder %s10, 1
        %s157 = scalar_select %p156, %s10, 1
        %s158 = smul.addr %s157, 2
        %s159 = smul.addr %s158, 8
        %s160 = scalar_lea.vmem %s0, %s159
      $region32: #{two_conv_forward.1} parent=27 // pred_fallthru
        _
    $region28: #{two_conv_forward.1} parent=5 // pred_fallthru
      _
    %p161 = scmp.le.s32.totalorder 1, %s10
    %p162 = scmp.lt.s32.totalorder %s10, 3
    %p163 = pnand %p161, %p162
    %p164 = pneg %p163
    // Predicated region
    $region33: #{two_conv_forward.1} parent=5 // pred_check
      _
    $region34: #{two_conv_forward.1} parent=5 // pred_check_branch
      %166 = sbr.rel (%p163) target = $region36
    $region35: #{two_conv_forward.1} parent=5 // pred_region
      %s167 = ssub.s32 %s10, 1
      %p168 = scmp.lt.s32.totalorder %s15, 1
      %s169 = scalar_select %p168, %s15, 1
      %s170 = smul.addr %s169, 2
      %s171 = smul.addr %s170, 8
      %s172 = scalar_lea.vmem %s0, %s171
      %p173 = pneg %p36
      %p174 = pneg %p33
      %p175 = pneg %p57
      %p176 = pneg %p54
      %p177 = pneg %p78
      %p178 = pneg %p75
      %p179 = pneg %p99
      %p180 = pneg %p96
      %p181 = pneg %p125
      %p182 = pneg %p122
      %p183 = scmp.lt.s32.totalorder %s15, 1
      %s184 = scalar_select %p183, %s15, 1
      %s185 = smul.addr %s184, 2
      %s186 = smul.addr %s185, 8
      %s187 = scalar_lea.vmem %s4, %s186
      %p188 = scmp.lt.s32.totalorder %s15, 1
      %s189 = scalar_select %p188, %s15, 1
      %s190 = smul.addr %s189, 2
      %s191 = smul.addr %s190, 8
      %s192 = scalar_lea.vmem %s0, %s191
      %p193 = scmp.lt.s32.totalorder %s15, 1
      %s194 = scalar_select %p193, %s15, 1
      %s195 = smul.addr %s194, 2
      %s196 = smul.addr %s195, 8
      %s197 = scalar_lea.vmem %s4, %s196
      %v199 = vld [vmem:[%s3] sm:$0xf]
      %200 = vst [vmem:[#allocation2] sm:$0xff] 0.0
      %201 = vst [vmem:[#allocation2 + $0x8] sm:$0xff] 0.0
      %202 = vst [vmem:[#allocation2 + $0x10] sm:$0x3] 0.0
      %v203 = vld [vmem:[%s192] sm:$0xff]
      %v204 = vld [vmem:[%s192 + $0x8] sm:$0xff]
      %vm205 = vcmask 523264
      %206 = vst.msk [vmem:[#allocation2 + $0x1] sm:$0xff] %vm205, %v203
      %207 = vst.msk [vmem:[#allocation2 + $0x9] sm:$0xff] %vm205, %v204
      %v208 = vld [vmem:[#allocation2] sm:$0xff]
      %v209 = vld [vmem:[#allocation2 + $0x8] sm:$0xff]
      %v210 = vld [vmem:[#allocation2 + $0x10] sm:$0x3]
      %vm214 = vcmask 1046528
      %v215 = vrot.slane %v208, 1
      %v216 = vrot.slane %v209, 1
      %v217 = vsel %vm214, %v215, %v216
      %v218 = vrot.slane %v210, 1
      %v219 = vsel %vm214, %v216, %v218
      %vm222 = vcmask 1045504
      %v223 = vrot.slane %v208, 2
      %v224 = vrot.slane %v209, 2
      %v225 = vsel %vm222, %v223, %v224
      %v226 = vrot.slane %v210, 2
      %v227 = vsel %vm222, %v224, %v226
      %v230 = vpack.c.bf16 %v209, %v208
      %v231 = vpack.c.bf16 %v219, %v217
      %v232 = vpack.c.bf16 %v227, %v225
      %v233 = vld [vmem:[%s1] sm:$0xf]
      %v234 = vld [vmem:[%s1 + $0x4] sm:$0xf]
      %v235 = vld [vmem:[%s1 + $0x8] sm:$0xf]
      %v236 = vld [vmem:[%s1 + $0xc] sm:$0xf]
      %v237 = vld [vmem:[%s1 + $0x10] sm:$0xf]
      %v238 = vld [vmem:[%s1 + $0x14] sm:$0xf]
      %v239 = vld [vmem:[%s1 + $0x18] sm:$0xf]
      %v240 = vld [vmem:[%s1 + $0x1c] sm:$0xf]
      %v241 = vld [vmem:[%s1 + $0x20] sm:$0xf]
      %v242 = vld [vmem:[%s1 + $0x24] sm:$0xf]
      %v243 = vld [vmem:[%s1 + $0x28] sm:$0xf]
      %v244 = vld [vmem:[%s1 + $0x2c] sm:$0xf]
      %v245 = vld [vmem:[%s1 + $0x30] sm:$0xf]
      %v246 = vld [vmem:[%s1 + $0x34] sm:$0xf]
      %v247 = vld [vmem:[%s1 + $0x38] sm:$0xf]
      %v248 = vld [vmem:[%s1 + $0x3c] sm:$0xf]
      %v249 = vld [vmem:[%s1 + $0x40] sm:$0xf]
      %v250 = vld [vmem:[%s1 + $0x44] sm:$0xf]
      %v251 = vld [vmem:[%s1 + $0x48] sm:$0xf]
      %v252 = vld [vmem:[%s1 + $0x4c] sm:$0xf]
      %v253 = vld [vmem:[%s1 + $0x50] sm:$0xf]
      %v254 = vld [vmem:[%s1 + $0x54] sm:$0xf]
      %v255 = vld [vmem:[%s1 + $0x58] sm:$0xf]
      %v256 = vld [vmem:[%s1 + $0x5c] sm:$0xf]
      %v257 = vld [vmem:[%s1 + $0x60] sm:$0xf]
      %v258 = vld [vmem:[%s1 + $0x64] sm:$0xf]
      %v259 = vld [vmem:[%s1 + $0x68] sm:$0xf]
      %v260 = vld [vmem:[%s1 + $0x6c] sm:$0xf]
      %v261 = vld [vmem:[%s1 + $0x70] sm:$0xf]
      %v262 = vld [vmem:[%s1 + $0x74] sm:$0xf]
      %v263 = vld [vmem:[%s1 + $0x78] sm:$0xf]
      %v264 = vld [vmem:[%s1 + $0x7c] sm:$0xf]
      %v265 = vld [vmem:[%s1 + $0x80] sm:$0xf]
      %v266 = vld [vmem:[%s1 + $0x84] sm:$0xf]
      %v267 = vld [vmem:[%s1 + $0x88] sm:$0xf]
      %v268 = vld [vmem:[%s1 + $0x8c] sm:$0xf]
      %v269 = vld [vmem:[%s1 + $0x90] sm:$0xf]
      %v270 = vld [vmem:[%s1 + $0x94] sm:$0xf]
      %v271 = vld [vmem:[%s1 + $0x98] sm:$0xf]
      %v272 = vld [vmem:[%s1 + $0x9c] sm:$0xf]
      %v273 = vld [vmem:[%s1 + $0xa0] sm:$0xf]
      %v274 = vld [vmem:[%s1 + $0xa4] sm:$0xf]
      %v275 = vld [vmem:[%s1 + $0xa8] sm:$0xf]
      %v276 = vld [vmem:[%s1 + $0xac] sm:$0xf]
      %v277 = vld [vmem:[%s1 + $0xb0] sm:$0xf]
      %v278 = vld [vmem:[%s1 + $0xb4] sm:$0xf]
      %v279 = vld [vmem:[%s1 + $0xb8] sm:$0xf]
      %v280 = vld [vmem:[%s1 + $0xbc] sm:$0xf]
      %v329 = vunpack.c.l.b16 %v233
      %v330 = vunpack.c.l.b16 %v234
      %v331 = vunpack.c.l.b16 %v235
      %v332 = vunpack.c.l.b16 %v236
      %v333 = vunpack.c.l.b16 %v237
      %v334 = vunpack.c.l.b16 %v238
      %v335 = vunpack.c.l.b16 %v239
      %v336 = vunpack.c.l.b16 %v240
      %v337 = vunpack.c.l.b16 %v241
      %v338 = vunpack.c.l.b16 %v242
      %v339 = vunpack.c.l.b16 %v243
      %v340 = vunpack.c.l.b16 %v244
      %v341 = vunpack.c.l.b16 %v245
      %v342 = vunpack.c.l.b16 %v246
      %v343 = vunpack.c.l.b16 %v247
      %v344 = vunpack.c.l.b16 %v248
      %v345 = vunpack.c.l.b16 %v249
      %v346 = vunpack.c.l.b16 %v250
      %v347 = vunpack.c.l.b16 %v251
      %v348 = vunpack.c.l.b16 %v252
      %v349 = vunpack.c.l.b16 %v253
      %v350 = vunpack.c.l.b16 %v254
      %v351 = vunpack.c.l.b16 %v255
      %v352 = vunpack.c.l.b16 %v256
      %v353 = vunpack.c.l.b16 %v257
      %v354 = vunpack.c.l.b16 %v258
      %v355 = vunpack.c.l.b16 %v259
      %v356 = vunpack.c.l.b16 %v260
      %v357 = vunpack.c.l.b16 %v261
      %v358 = vunpack.c.l.b16 %v262
      %v359 = vunpack.c.l.b16 %v263
      %v360 = vunpack.c.l.b16 %v264
      %v361 = vunpack.c.l.b16 %v265
      %v362 = vunpack.c.l.b16 %v266
      %v363 = vunpack.c.l.b16 %v267
      %v364 = vunpack.c.l.b16 %v268
      %v365 = vunpack.c.l.b16 %v269
      %v366 = vunpack.c.l.b16 %v270
      %v367 = vunpack.c.l.b16 %v271
      %v368 = vunpack.c.l.b16 %v272
      %v369 = vunpack.c.l.b16 %v273
      %v370 = vunpack.c.l.b16 %v274
      %v371 = vunpack.c.l.b16 %v275
      %v372 = vunpack.c.l.b16 %v276
      %v373 = vunpack.c.l.b16 %v277
      %v374 = vunpack.c.l.b16 %v278
      %v375 = vunpack.c.l.b16 %v279
      %v376 = vunpack.c.l.b16 %v280
      %v377 = vpack.c.b16 %v330, %v329
      %v378 = vpack.c.b16 %v332, %v331
      %v379 = vpack.c.b16 %v334, %v333
      %v380 = vpack.c.b16 %v336, %v335
      %v381 = vpack.c.b16 %v338, %v337
      %v382 = vpack.c.b16 %v340, %v339
      %v383 = vpack.c.b16 %v342, %v341
      %v384 = vpack.c.b16 %v344, %v343
      %v385 = vpack.c.b16 %v346, %v345
      %v386 = vpack.c.b16 %v348, %v347
      %v387 = vpack.c.b16 %v350, %v349
      %v388 = vpack.c.b16 %v352, %v351
      %v389 = vpack.c.b16 %v354, %v353
      %v390 = vpack.c.b16 %v356, %v355
      %v391 = vpack.c.b16 %v358, %v357
      %v392 = vpack.c.b16 %v360, %v359
      %v393 = vpack.c.b16 %v362, %v361
      %v394 = vpack.c.b16 %v364, %v363
      %v395 = vpack.c.b16 %v366, %v365
      %v396 = vpack.c.b16 %v368, %v367
      %v397 = vpack.c.b16 %v370, %v369
      %v398 = vpack.c.b16 %v372, %v371
      %v399 = vpack.c.b16 %v374, %v373
      %v400 = vpack.c.b16 %v376, %v375
      %425 = vmatprep.subr.bf16.mxu0 0
      %426 = vmatpush1.bf16.msra.mxu0 %v377
      %427 = vmatprep.subr.bf16.mxu0 0
      %428 = vmatpush1.bf16.msra.mxu0 %v378
      %429 = vmatprep.subr.bf16.mxu0 0
      %430 = vmatpush1.bf16.msra.mxu0 %v379
      %431 = vmatprep.subr.bf16.mxu0 0
      %432 = vmatpush1.bf16.msra.mxu0 %v380
      %433 = vmatprep.subr.bf16.mxu0 0
      %434 = vmatpush1.bf16.msra.mxu0 %v381
      %435 = vmatprep.subr.bf16.mxu0 0
      %436 = vmatpush1.bf16.msra.mxu0 %v382
      %437 = vmatprep.subr.bf16.mxu0 0
      %438 = vmatpush1.bf16.msra.mxu0 %v383
      %439 = vmatprep.subr.bf16.mxu0 0
      %440 = vmatpush1.bf16.msra.mxu0 %v384
      %441 = vmatprep.subr.bf16.mxu0 0
      %442 = vmatpush1.bf16.msra.mxu0 %v385
      %443 = vmatprep.subr.bf16.mxu0 0
      %444 = vmatpush1.bf16.msra.mxu0 %v386
      %445 = vmatprep.subr.bf16.mxu0 0
      %446 = vmatpush1.bf16.msra.mxu0 %v387
      %447 = vmatprep.subr.bf16.mxu0 0
      %448 = vmatpush1.bf16.msra.mxu0 %v388
      %449 = vmatprep.subr.bf16.mxu0 0
      %450 = vmatpush1.bf16.msra.mxu0 %v389
      %451 = vmatprep.subr.bf16.mxu0 0
      %452 = vmatpush1.bf16.msra.mxu0 %v390
      %453 = vmatprep.subr.bf16.mxu0 0
      %454 = vmatpush1.bf16.msra.mxu0 %v391
      %455 = vmatprep.subr.bf16.mxu0 0
      %456 = vmatpush1.bf16.msra.mxu0 %v392
      %457 = vmatprep.mubr.bf16.mxu0 %v231
      %458 = vmatmul.mubr.bf16.gmra.mrb[0].mxu0 %v230
      %v459 = vpop.f32.mrb[0].mxu0
      %v460 = vadd.f32 0.0, %v459
      %v461 = vpop.f32.mrb[0].mxu0
      %v462 = vpop.f32.mrb[0].mxu0
      %v463 = vadd.f32 0.0, %v462
      %v464 = vpop.f32.mrb[0].mxu0
      %465 = vdwg.mxu0
      %466 = vmatprep.subr.bf16.mxu0 0
      %467 = vmatpush1.bf16.msra.mxu0 %v393
      %468 = vmatprep.subr.bf16.mxu0 0
      %469 = vmatpush1.bf16.msra.mxu0 %v394
      %470 = vmatprep.subr.bf16.mxu0 0
      %471 = vmatpush1.bf16.msra.mxu0 %v395
      %472 = vmatprep.subr.bf16.mxu0 0
      %473 = vmatpush1.bf16.msra.mxu0 %v396
      %474 = vmatprep.subr.bf16.mxu0 0
      %475 = vmatpush1.bf16.msra.mxu0 %v397
      %476 = vmatprep.subr.bf16.mxu0 0
      %477 = vmatpush1.bf16.msra.mxu0 %v398
      %478 = vmatprep.subr.bf16.mxu0 0
      %479 = vmatpush1.bf16.msra.mxu0 %v399
      %480 = vmatprep.subr.bf16.mxu0 0
      %481 = vmatpush1.bf16.msra.mxu0 %v400
      %482 = vmatprep.subr.bf16.mxu0 0
      %483 = vmatpush1.bf16.msra.mxu0 0
      %484 = vmatprep.subr.bf16.mxu0 0
      %485 = vmatpush1.bf16.msra.mxu0 0
      %486 = vmatprep.subr.bf16.mxu0 0
      %487 = vmatpush1.bf16.msra.mxu0 0
      %488 = vmatprep.subr.bf16.mxu0 0
      %489 = vmatpush1.bf16.msra.mxu0 0
      %490 = vmatprep.subr.bf16.mxu0 0
      %491 = vmatpush1.bf16.msra.mxu0 0
      %492 = vmatprep.subr.bf16.mxu0 0
      %493 = vmatpush1.bf16.msra.mxu0 0
      %494 = vmatprep.subr.bf16.mxu0 0
      %495 = vmatpush1.bf16.msra.mxu0 0
      %496 = vmatprep.subr.bf16.mxu0 0
      %497 = vmatpush1.bf16.msra.mxu0 0
      %498 = vmatprep.mubr.bf16.mxu0 0
      %499 = vmatmul.mubr.bf16.gmra.mrb[0].mxu0 %v232
      %v500 = vpop.f32.mrb[0].mxu0
      %v501 = vadd.f32 %v460, %v500
      %v502 = vpop.f32.mrb[0].mxu0
      %v503 = vpop.f32.mrb[0].mxu0
      %v504 = vadd.f32 %v463, %v503
      %v505 = vpop.f32.mrb[0].mxu0
      %506 = vdwg.mxu0
      %v507 = vlaneseq
      %v508 = vshrl.u32 %v507, 7
      %v509 = vsub.s32 0, %v508
      %v510 = vrot.slane %v199, %v509
      %v511 = vmul.f32 %v501, %v510
      %v512 = vmul.f32 %v504, %v510
      %v513 = vlaneseq
      %v514 = vshrl.u32 %v513, 7
      %v515 = vsub.s32 1, %v514
      %v516 = vrot.slane %v199, %v515
      %v517 = vadd.f32 %v511, %v516
      %v518 = vadd.f32 %v512, %v516
      %v519 = vmax.f32 %v517, 0.0
      %v520 = vmax.f32 %v518, 0.0
      %521 = vst [vmem:[#allocation3] sm:$0xff] 0.0
      %522 = vst [vmem:[#allocation3 + $0x8] sm:$0xff] 0.0
      %523 = vst [vmem:[#allocation3 + $0x10] sm:$0x3] 0.0
      %524 = vst [vmem:[#allocation3 + $0x1] sm:$0xff] %v519
      %525 = vst [vmem:[#allocation3 + $0x9] sm:$0xff] %v520
      %v526 = vld [vmem:[#allocation3] sm:$0xff]
      %v527 = vld [vmem:[#allocation3 + $0x8] sm:$0xff]
      %v528 = vld [vmem:[#allocation3 + $0x10] sm:$0x3]
      %v532 = vrot.slane %v526, 1
      %v533 = vrot.slane %v527, 1
      %v534 = vsel %vm214, %v532, %v533
      %v535 = vrot.slane %v528, 1
      %v536 = vsel %vm214, %v533, %v535
      %v539 = vrot.slane %v526, 2
      %v540 = vrot.slane %v527, 2
      %v541 = vsel %vm222, %v539, %v540
      %v542 = vrot.slane %v528, 2
      %v543 = vsel %vm222, %v540, %v542
      %v546 = vpack.c.bf16 %v527, %v526
      %v547 = vpack.c.bf16 %v536, %v534
      %v548 = vpack.c.bf16 %v543, %v541
      %v549 = vld [vmem:[%s2] sm:$0xf]
      %v550 = vld [vmem:[%s2 + $0x4] sm:$0xf]
      %v551 = vld [vmem:[%s2 + $0x8] sm:$0xf]
      %v552 = vld [vmem:[%s2 + $0xc] sm:$0xf]
      %v553 = vld [vmem:[%s2 + $0x10] sm:$0xf]
      %v554 = vld [vmem:[%s2 + $0x14] sm:$0xf]
      %v555 = vld [vmem:[%s2 + $0x18] sm:$0xf]
      %v556 = vld [vmem:[%s2 + $0x1c] sm:$0xf]
      %v557 = vld [vmem:[%s2 + $0x20] sm:$0xf]
      %v558 = vld [vmem:[%s2 + $0x24] sm:$0xf]
      %v559 = vld [vmem:[%s2 + $0x28] sm:$0xf]
      %v560 = vld [vmem:[%s2 + $0x2c] sm:$0xf]
      %v561 = vld [vmem:[%s2 + $0x30] sm:$0xf]
      %v562 = vld [vmem:[%s2 + $0x34] sm:$0xf]
      %v563 = vld [vmem:[%s2 + $0x38] sm:$0xf]
      %v564 = vld [vmem:[%s2 + $0x3c] sm:$0xf]
      %v565 = vld [vmem:[%s2 + $0x40] sm:$0xf]
      %v566 = vld [vmem:[%s2 + $0x44] sm:$0xf]
      %v567 = vld [vmem:[%s2 + $0x48] sm:$0xf]
      %v568 = vld [vmem:[%s2 + $0x4c] sm:$0xf]
      %v569 = vld [vmem:[%s2 + $0x50] sm:$0xf]
      %v570 = vld [vmem:[%s2 + $0x54] sm:$0xf]
      %v571 = vld [vmem:[%s2 + $0x58] sm:$0xf]
      %v572 = vld [vmem:[%s2 + $0x5c] sm:$0xf]
      %v573 = vld [vmem:[%s2 + $0x60] sm:$0xf]
      %v574 = vld [vmem:[%s2 + $0x64] sm:$0xf]
      %v575 = vld [vmem:[%s2 + $0x68] sm:$0xf]
      %v576 = vld [vmem:[%s2 + $0x6c] sm:$0xf]
      %v577 = vld [vmem:[%s2 + $0x70] sm:$0xf]
      %v578 = vld [vmem:[%s2 + $0x74] sm:$0xf]
      %v579 = vld [vmem:[%s2 + $0x78] sm:$0xf]
      %v580 = vld [vmem:[%s2 + $0x7c] sm:$0xf]
      %v581 = vld [vmem:[%s2 + $0x80] sm:$0xf]
      %v582 = vld [vmem:[%s2 + $0x84] sm:$0xf]
      %v583 = vld [vmem:[%s2 + $0x88] sm:$0xf]
      %v584 = vld [vmem:[%s2 + $0x8c] sm:$0xf]
      %v585 = vld [vmem:[%s2 + $0x90] sm:$0xf]
      %v586 = vld [vmem:[%s2 + $0x94] sm:$0xf]
      %v587 = vld [vmem:[%s2 + $0x98] sm:$0xf]
      %v588 = vld [vmem:[%s2 + $0x9c] sm:$0xf]
      %v589 = vld [vmem:[%s2 + $0xa0] sm:$0xf]
      %v590 = vld [vmem:[%s2 + $0xa4] sm:$0xf]
      %v591 = vld [vmem:[%s2 + $0xa8] sm:$0xf]
      %v592 = vld [vmem:[%s2 + $0xac] sm:$0xf]
      %v593 = vld [vmem:[%s2 + $0xb0] sm:$0xf]
      %v594 = vld [vmem:[%s2 + $0xb4] sm:$0xf]
      %v595 = vld [vmem:[%s2 + $0xb8] sm:$0xf]
      %v596 = vld [vmem:[%s2 + $0xbc] sm:$0xf]
      %v645 = vunpack.c.l.b16 %v549
      %v646 = vunpack.c.l.b16 %v550
      %v647 = vunpack.c.l.b16 %v551
      %v648 = vunpack.c.l.b16 %v552
      %v649 = vunpack.c.l.b16 %v553
      %v650 = vunpack.c.l.b16 %v554
      %v651 = vunpack.c.l.b16 %v555
      %v652 = vunpack.c.l.b16 %v556
      %v653 = vunpack.c.l.b16 %v557
      %v654 = vunpack.c.l.b16 %v558
      %v655 = vunpack.c.l.b16 %v559
      %v656 = vunpack.c.l.b16 %v560
      %v657 = vunpack.c.l.b16 %v561
      %v658 = vunpack.c.l.b16 %v562
      %v659 = vunpack.c.l.b16 %v563
      %v660 = vunpack.c.l.b16 %v564
      %v661 = vunpack.c.l.b16 %v565
      %v662 = vunpack.c.l.b16 %v566
      %v663 = vunpack.c.l.b16 %v567
      %v664 = vunpack.c.l.b16 %v568
      %v665 = vunpack.c.l.b16 %v569
      %v666 = vunpack.c.l.b16 %v570
      %v667 = vunpack.c.l.b16 %v571
      %v668 = vunpack.c.l.b16 %v572
      %v669 = vunpack.c.l.b16 %v573
      %v670 = vunpack.c.l.b16 %v574
      %v671 = vunpack.c.l.b16 %v575
      %v672 = vunpack.c.l.b16 %v576
      %v673 = vunpack.c.l.b16 %v577
      %v674 = vunpack.c.l.b16 %v578
      %v675 = vunpack.c.l.b16 %v579
      %v676 = vunpack.c.l.b16 %v580
      %v677 = vunpack.c.l.b16 %v581
      %v678 = vunpack.c.l.b16 %v582
      %v679 = vunpack.c.l.b16 %v583
      %v680 = vunpack.c.l.b16 %v584
      %v681 = vunpack.c.l.b16 %v585
      %v682 = vunpack.c.l.b16 %v586
      %v683 = vunpack.c.l.b16 %v587
      %v684 = vunpack.c.l.b16 %v588
      %v685 = vunpack.c.l.b16 %v589
      %v686 = vunpack.c.l.b16 %v590
      %v687 = vunpack.c.l.b16 %v591
      %v688 = vunpack.c.l.b16 %v592
      %v689 = vunpack.c.l.b16 %v593
      %v690 = vunpack.c.l.b16 %v594
      %v691 = vunpack.c.l.b16 %v595
      %v692 = vunpack.c.l.b16 %v596
      %v693 = vpack.c.b16 %v646, %v645
      %v694 = vpack.c.b16 %v648, %v647
      %v695 = vpack.c.b16 %v650, %v649
      %v696 = vpack.c.b16 %v652, %v651
      %v697 = vpack.c.b16 %v654, %v653
      %v698 = vpack.c.b16 %v656, %v655
      %v699 = vpack.c.b16 %v658, %v657
      %v700 = vpack.c.b16 %v660, %v659
      %v701 = vpack.c.b16 %v662, %v661
      %v702 = vpack.c.b16 %v664, %v663
      %v703 = vpack.c.b16 %v666, %v665
      %v704 = vpack.c.b16 %v668, %v667
      %v705 = vpack.c.b16 %v670, %v669
      %v706 = vpack.c.b16 %v672, %v671
      %v707 = vpack.c.b16 %v674, %v673
      %v708 = vpack.c.b16 %v676, %v675
      %v709 = vpack.c.b16 %v678, %v677
      %v710 = vpack.c.b16 %v680, %v679
      %v711 = vpack.c.b16 %v682, %v681
      %v712 = vpack.c.b16 %v684, %v683
      %v713 = vpack.c.b16 %v686, %v685
      %v714 = vpack.c.b16 %v688, %v687
      %v715 = vpack.c.b16 %v690, %v689
      %v716 = vpack.c.b16 %v692, %v691
      %741 = vmatprep.subr.bf16.mxu0 0
      %742 = vmatpush1.bf16.msra.mxu0 %v693
      %743 = vmatprep.subr.bf16.mxu0 0
      %744 = vmatpush1.bf16.msra.mxu0 %v694
      %745 = vmatprep.subr.bf16.mxu0 0
      %746 = vmatpush1.bf16.msra.mxu0 %v695
      %747 = vmatprep.subr.bf16.mxu0 0
      %748 = vmatpush1.bf16.msra.mxu0 %v696
      %749 = vmatprep.subr.bf16.mxu0 0
      %750 = vmatpush1.bf16.msra.mxu0 %v697
      %751 = vmatprep.subr.bf16.mxu0 0
      %752 = vmatpush1.bf16.msra.mxu0 %v698
      %753 = vmatprep.subr.bf16.mxu0 0
      %754 = vmatpush1.bf16.msra.mxu0 %v699
      %755 = vmatprep.subr.bf16.mxu0 0
      %756 = vmatpush1.bf16.msra.mxu0 %v700
      %757 = vmatprep.subr.bf16.mxu0 0
      %758 = vmatpush1.bf16.msra.mxu0 %v701
      %759 = vmatprep.subr.bf16.mxu0 0
      %760 = vmatpush1.bf16.msra.mxu0 %v702
      %761 = vmatprep.subr.bf16.mxu0 0
      %762 = vmatpush1.bf16.msra.mxu0 %v703
      %763 = vmatprep.subr.bf16.mxu0 0
      %764 = vmatpush1.bf16.msra.mxu0 %v704
      %765 = vmatprep.subr.bf16.mxu0 0
      %766 = vmatpush1.bf16.msra.mxu0 %v705
      %767 = vmatprep.subr.bf16.mxu0 0
      %768 = vmatpush1.bf16.msra.mxu0 %v706
      %769 = vmatprep.subr.bf16.mxu0 0
      %770 = vmatpush1.bf16.msra.mxu0 %v707
      %771 = vmatprep.subr.bf16.mxu0 0
      %772 = vmatpush1.bf16.msra.mxu0 %v708
      %773 = vmatprep.mubr.bf16.mxu0 %v547
      %774 = vmatmul.mubr.bf16.gmra.mrb[0].mxu0 %v546
      %v775 = vpop.f32.mrb[0].mxu0
      %v776 = vadd.f32 0.0, %v775
      %v777 = vpop.f32.mrb[0].mxu0
      %v778 = vpop.f32.mrb[0].mxu0
      %v779 = vadd.f32 0.0, %v778
      %v780 = vpop.f32.mrb[0].mxu0
      %781 = vdwg.mxu0
      %782 = vmatprep.subr.bf16.mxu0 0
      %783 = vmatpush1.bf16.msra.mxu0 %v709
      %784 = vmatprep.subr.bf16.mxu0 0
      %785 = vmatpush1.bf16.msra.mxu0 %v710
      %786 = vmatprep.subr.bf16.mxu0 0
      %787 = vmatpush1.bf16.msra.mxu0 %v711
      %788 = vmatprep.subr.bf16.mxu0 0
      %789 = vmatpush1.bf16.msra.mxu0 %v712
      %790 = vmatprep.subr.bf16.mxu0 0
      %791 = vmatpush1.bf16.msra.mxu0 %v713
      %792 = vmatprep.subr.bf16.mxu0 0
      %793 = vmatpush1.bf16.msra.mxu0 %v714
      %794 = vmatprep.subr.bf16.mxu0 0
      %795 = vmatpush1.bf16.msra.mxu0 %v715
      %796 = vmatprep.subr.bf16.mxu0 0
      %797 = vmatpush1.bf16.msra.mxu0 %v716
      %798 = vmatprep.subr.bf16.mxu0 0
      %799 = vmatpush1.bf16.msra.mxu0 0
      %800 = vmatprep.subr.bf16.mxu0 0
      %801 = vmatpush1.bf16.msra.mxu0 0
      %802 = vmatprep.subr.bf16.mxu0 0
      %803 = vmatpush1.bf16.msra.mxu0 0
      %804 = vmatprep.subr.bf16.mxu0 0
      %805 = vmatpush1.bf16.msra.mxu0 0
      %806 = vmatprep.subr.bf16.mxu0 0
      %807 = vmatpush1.bf16.msra.mxu0 0
      %808 = vmatprep.subr.bf16.mxu0 0
      %809 = vmatpush1.bf16.msra.mxu0 0
      %810 = vmatprep.subr.bf16.mxu0 0
      %811 = vmatpush1.bf16.msra.mxu0 0
      %812 = vmatprep.subr.bf16.mxu0 0
      %813 = vmatpush1.bf16.msra.mxu0 0
      %814 = vmatprep.mubr.bf16.mxu0 0
      %815 = vmatmul.mubr.bf16.gmra.mrb[0].mxu0 %v548
      %v816 = vpop.f32.mrb[0].mxu0
      %v817 = vadd.f32 %v776, %v816
      %v818 = vpop.f32.mrb[0].mxu0
      %v819 = vpop.f32.mrb[0].mxu0
      %v820 = vadd.f32 %v779, %v819
      %v821 = vpop.f32.mrb[0].mxu0
      %822 = vdwg.mxu0
      %v823 = vlaneseq
      %v824 = vshrl.u32 %v823, 7
      %v825 = vsub.s32 2, %v824
      %v826 = vrot.slane %v199, %v825
      %v827 = vmul.f32 %v817, %v826
      %v828 = vmul.f32 %v820, %v826
      %v829 = vlaneseq
      %v830 = vshrl.u32 %v829, 7
      %v831 = vsub.s32 3, %v830
      %v832 = vrot.slane %v199, %v831
      %v833 = vadd.f32 %v827, %v832
      %v834 = vadd.f32 %v828, %v832
      %v835 = vmax.f32 %v833, 0.0
      %v836 = vmax.f32 %v834, 0.0
      %837 = vst [vmem:[%s197] sm:$0xff] %v835
      %838 = vst [vmem:[%s197 + $0x8] sm:$0xff] %v836
      %p839 = scmp.lt.s32.totalorder %s15, 1
      %s840 = scalar_select %p839, %s15, 1
      %s841 = smul.addr %s840, 2
      %s842 = smul.addr %s841, 8
      %s843 = scalar_lea.vmem %s4, %s842
      // Predicated region
      $region37: #{two_conv_forward.1} parent=35 // pred_check
        %p844 = pneg %p122
      $region38: #{two_conv_forward.1} parent=35 // pred_check_branch
        %846 = sbr.rel (%p844) target = $region40
      $region39: #{two_conv_forward.1} parent=35 // pred_region
        _
      $region40: #{two_conv_forward.1} parent=35 // pred_fallthru
        _
    $region36: #{two_conv_forward.1} parent=5 // pred_fallthru
      _
    %p847 = scmp.le.s32.totalorder 2, %s10
    // Predicated region
    $region41: #{two_conv_forward.1} parent=5 // pred_check
      %p848 = pneg %p847
    $region42: #{two_conv_forward.1} parent=5 // pred_check_branch
      %850 = sbr.rel (%p848) target = $region44
    $region43: #{two_conv_forward.1} parent=5 // pred_region
      %s851 = ssub.s32 %s10, 2
      // Predicated region
      $region45: #{two_conv_forward.1} parent=43 // pred_check
        %p852 = pneg %p128
      $region46: #{two_conv_forward.1} parent=43 // pred_check_branch
        %854 = sbr.rel (%p852) target = $region48
      $region47: #{two_conv_forward.1} parent=43 // pred_region
        %p855 = scmp.lt.s32.totalorder %s16, 1
        %s856 = scalar_select %p855, %s16, 1
        %s857 = smul.addr %s856, 2
        %s858 = smul.addr %s857, 8
        %s859 = scalar_lea.vmem %s4, %s858
      $region48: #{two_conv_forward.1} parent=43 // pred_fallthru
        _
    $region44: #{two_conv_forward.1} parent=5 // pred_fallthru
      _
  $region6: #{two_conv_forward.1} parent=0 // loop_footer
    %s14 = sadd.s32 1, %s10
  $region7: #{two_conv_forward.1} parent=0 // loop_footer_branch
    %9 = sbr.rel target = $region3
  $region8: #{two_conv_forward.1} parent=0 // loop_exit
    _

</llo_original>
